<compile_context>
chip_gen: v5e
topology: v5e:2x2
jax: 0.10.0
libtpu: 0.0.40
codegen_flags: <defaults>
</compile_context>

<pallas_src>
import functools

import jax
import jax.numpy as jnp
import numpy as np
from jax.experimental import pallas as pl
from jax.experimental.pallas import tpu as pltpu

_LANES = 128
# 2048 rows x 128 lanes x 4 B = 1 MiB per output block (2 MiB double-buffered).
_ROWS_TILE = 2048


def _constant_fill_kernel(val_ref, out_ref):
    # val_ref lives in SMEM as a (1, 1) scalar; hoist the scalar read once and
    # splat it into the whole output tile (pure store-bound kernel).
    v = val_ref[0, 0]
    out_ref[...] = jnp.full(out_ref.shape, v, dtype=out_ref.dtype)


@functools.partial(jax.jit, static_argnames=("size",))
def _constant_fill(value, size):
    """value: (1,) f32 parameter. Returns an array of shape `size` filled with it."""
    n = 1
    for s in size:
        n *= int(s)

    if n == 0:
        # Degenerate empty output: skip the kernel launch entirely.
        return jnp.zeros(size, dtype=jnp.float32)

    rows = int(pl.cdiv(n, _LANES))

    if rows <= _ROWS_TILE:
        # Single block covering the whole slab (full-extent block shape is
        # always legal, avoids over-allocating for tiny fills).
        rows_tile = rows
        grid = (1,)
    else:
        # Multi-block path: fixed 2048-row tiles (multiple of 8 sublanes), the
        # last block may be partial and is handled by a bounded store DMA.
        rows_tile = _ROWS_TILE
        grid = (int(pl.cdiv(rows, rows_tile)),)

    slab = pl.pallas_call(
        _constant_fill_kernel,
        out_shape=jax.ShapeDtypeStruct((rows, _LANES), jnp.float32),
        grid=grid,
        in_specs=[pl.BlockSpec(memory_space=pltpu.SMEM)],
        out_specs=pl.BlockSpec((rows_tile, _LANES), lambda i: (i, 0)),
        compiler_params=pltpu.CompilerParams(
            dimension_semantics=("parallel",),
        ),
    )(value.reshape(1, 1).astype(jnp.float32))

    if n == rows * _LANES:
        # Lane-conforming size: row-major contiguous reshape, metadata only.
        return slab.reshape(size)
    # Ragged tail: at most 127 padded elements live in the final row; slice
    # them off and reshape to the requested size.
    return slab.reshape(-1)[:n].reshape(size)


class ConstantPallas:
    """JAX/Pallas port of torch module `Constant`."""

    def __init__(self, value: float, do_rsample: bool = False):
        self.do_rsample = do_rsample
        # torch.nn.Parameter(torch.Tensor([value])) -> shape (1,) float32
        self.value = jnp.asarray([value], dtype=jnp.float32)

    def __call__(self, size=1, device=None):
        # `device` is accepted for signature parity with the torch module and
        # ignored (JAX places the result on the default backend).
        if not hasattr(size, "__getitem__"):
            size = (size,)
        size = tuple(int(s) for s in size)
        # do_rsample True/False: both branches are value.repeat(size).
        return _constant_fill(self.value, size)


if __name__ == "__main__":
    key = jax.random.PRNGKey(0)
    # Deterministic "parameter" value drawn from the PRNG (the module's
    # __init__ just stores a single float).
    value = float(jax.random.uniform(key, ()))

    module = ConstantPallas(value=value, do_rsample=False)

    # Small shape consistent with the forward signature (TensorSize tuple).
    # n = 2*4*16*16 = 2048 -> lane-conforming fast path (metadata reshape).
    size = (2, 4, 16, 16)
    out = jax.block_until_ready(module(size))
    ref = np.full(size, value, dtype=np.float32)
    np.testing.assert_allclose(np.asarray(out), ref, rtol=0, atol=0)

    # Scalar-size path (size=8 -> shape (8,)), ragged tail handled by slice.
    out_scalar = jax.block_until_ready(module(8))
    np.testing.assert_allclose(
        np.asarray(out_scalar), np.full((8,), value, dtype=np.float32)
    )

    # Ragged multi-dim path (n = 105, not a multiple of 128).
    out_ragged = jax.block_until_ready(module((3, 5, 7)))
    np.testing.assert_allclose(
        np.asarray(out_ragged), np.full((3, 5, 7), value, dtype=np.float32)
    )

    # Multi-block path exercising the 1-D parallel grid
    # (n = 1024*1024 -> 8192 rows -> 4 grid steps of 2048-row blocks).
    big = (1024, 1024)
    out_big = jax.block_until_ready(module(big))
    assert out_big.shape == big
    np.testing.assert_allclose(
        np.asarray(out_big[0, :4]), np.full((4,), value, dtype=np.float32)
    )
    np.testing.assert_allclose(
        np.asarray(out_big[-1, -4:]), np.full((4,), value, dtype=np.float32)
    )

    print("KERNEL_OK")
</pallas_src>

<mosaic_0001>
module attributes {stable_mosaic.version = 11 : i64} {
  func.func @_constant_fill_kernel(%arg0: i32, %arg1: memref<1x1xf32, #tpu.memory_space<smem>>, %arg2: memref<16x128xf32, #tpu.memory_space<vmem>>) attributes {dimension_semantics = [#tpu.dimension_semantics<parallel>], iteration_bounds = array<i64: 1>, scalar_prefetch = 0 : i64, scratch_operands = 0 : i64, tpu.core_type = #tpu.core_type<tc>, window_params = [{transform_indices = @transform_0, window_bounds = array<i64: 1, 1>}, {transform_indices = @transform_1, window_bounds = array<i64: 16, 128>}]} {
    %c0 = arith.constant 0 : index
    %c0_0 = arith.constant 0 : index
    %0 = memref.load %arg1[%c0, %c0_0] : memref<1x1xf32, #tpu.memory_space<smem>>
    %1 = vector.broadcast %0 : f32 to vector<16x128xf32>
    %c0_1 = arith.constant 0 : index
    %c0_2 = arith.constant 0 : index
    %2 = vector.load %arg2[%c0_1, %c0_2] : memref<16x128xf32, #tpu.memory_space<vmem>>, vector<16x128xf32>
    tpu.vector_store %arg2[%c0_1, %c0_2], %1 {strides = array<i32>} : memref<16x128xf32, #tpu.memory_space<vmem>>, vector<16x128xf32>,
    return
  }
  func.func @transform_0(%arg0: i32) -> (i32, i32) {
    %c0_i32 = arith.constant 0 : i32
    %c0_i32_0 = arith.constant 0 : i32
    %c0_i32_1 = arith.constant 0 : i32
    return %c0_i32, %c0_i32_0 : i32, i32
  }
  func.func @transform_1(%arg0: i32) -> (i32, i32) {
    %c0_i32 = arith.constant 0 : i32
    %c0_i32_0 = arith.constant 0 : i32
    return %arg0, %c0_i32 : i32, i32
  }
}

</mosaic_0001>

<llo_original>
// kernel: _constant_fill.1
$region0: #{_constant_fill.1}
  #allocation0 [shape = 'u32[]', space=smem, size = 0x4, offset = 0x4, fixed_abs, tag = 'smem constant byte address 0x4 - core index']
  #allocation1 [shape = 'u32[72,128]{1,0:T(1,128)}', space=vmem, size = 0x9000, scoped, tag = 'internal scratch']
  #allocation2 [shape = 'f32[1,1]{1,0:T(1,128)S(6)}', space=smem, size = 0x200, scoped, tag = 'scoped memory for _constant_fill.1']
  %s0 = inlined_call_operand.<no memory space> [shape: f32[1,1], index: 0, kind: input, shape index: {}]
  %s1 = inlined_call_operand.vmem [shape: f32[16,128], index: 1, kind: output, shape index: {}]
  %s2 = sld [smem:[#allocation0]]
  $region14: #{_constant_fill.1} parent=0
    _
  %s4 = ssub.s32 1, %s2
  %s5 = scalar_select 0, %s4, %s2
  %6 = sst [smem:[#allocation2]] %s0
  // Predicated region
  $region2: #{_constant_fill.1} parent=0 // pred_check
    _
  $region3: #{_constant_fill.1} parent=0 // pred_check_branch
    %8 = sbr.rel (0) target = $region5
  $region4: #{_constant_fill.1} parent=0 // pred_region
    _
  $region5: #{_constant_fill.1} parent=0 // pred_fallthru
    _
  %s9 = sld [smem:[#allocation2]]
  %v10 = vstv %s9
  %11 = vst [vmem:[%s1] sm:$0xff] %v10
  %12 = vst [vmem:[%s1 + $0x8] sm:$0xff] %v10
  // Predicated region
  $region6: #{_constant_fill.1} parent=0 // pred_check
    _
  $region7: #{_constant_fill.1} parent=0 // pred_check_branch
    %14 = sbr.rel (0) target = $region9
  $region8: #{_constant_fill.1} parent=0 // pred_region
    _
  $region9: #{_constant_fill.1} parent=0 // pred_fallthru
    _
  // Predicated region
  $region10: #{_constant_fill.1} parent=0 // pred_check
    _
  $region11: #{_constant_fill.1} parent=0 // pred_check_branch
    %16 = sbr.rel (0) target = $region13
  $region12: #{_constant_fill.1} parent=0 // pred_region
    _
  $region13: #{_constant_fill.1} parent=0 // pred_fallthru
    _

</llo_original>
